<compile_context>
chip_gen: v6e
topology: v6e:2x2x1
jax: 0.10.0
libtpu: 0.0.40
codegen_flags: <defaults>
</compile_context>

<pallas_src>
import functools

import jax
import jax.numpy as jnp
from jax import lax
from jax.experimental import pallas as pl
from jax.experimental.pallas import tpu as pltpu

_WORKING_SET_BYTES = 8 * 1024 * 1024   # padded, double-buffered in+out per step
_MIN_GRID_STEPS = 4                    # keep a few steps for pipelining / 2 TCs


def _round_up(v: int, m: int) -> int:
    return -(-v // m) * m


def _sublane_tile(itemsize: int) -> int:
    # 8 rows for 4-byte, 16 for 2-byte, 32 for 1-byte dtypes.
    return max(8, 32 // itemsize)


def _vmem_limit_bytes() -> int:
    cap = 64 * 1024 * 1024  # assume the smallest per-TC VMEM (v7x) if unknown
    try:
        info = pltpu.get_tpu_info()
        cap = int(getattr(info, "vmem_capacity_bytes", cap))
    except Exception:
        pass
    # Half of physical VMEM: 32 MiB on v7x, 64 MiB on v5e/v6e. Plenty of
    # headroom over the <=8 MiB padded working set we actually request.
    return min(max(cap // 2, 16 * 1024 * 1024), 64 * 1024 * 1024)


def _choose_spatial_tile(s: int, lane_cap: int, batch: int) -> int:
    """Pick the spatial (lane) tile: a multiple of 128 (or the full extent),
    capped by the VMEM-derived `lane_cap`, small enough that the total grid
    has at least a few steps, and preferring divisors of `s` so the last tile
    is not ragged."""
    want_tiles = -(-_MIN_GRID_STEPS // max(batch, 1))  # ceil(min_steps / batch)
    if want_tiles > 1:
        # Don't shatter tiny maps below 512 lanes just to create steps.
        size_cap = max(512, (s // want_tiles) // 128 * 128)
    else:
        size_cap = s
    ts_max = min(lane_cap, size_cap, s)
    if ts_max >= s:
        return s
    ts_max = max(128, (ts_max // 128) * 128)
    for ts in range(ts_max, 127, -128):
        if s % ts == 0:
            return ts
    return ts_max  # ragged tail; Pallas masks the partial last block


# --------------------------------------------------------------------------- #
# Fused kernel: copy input channels + generate coordinate channels in-place.
# --------------------------------------------------------------------------- #
def _add_coords_kernel(x_ref, o_ref, *, ts, width, scale_x, scale_y, with_r):
    # x_ref: (1, C, TS), o_ref: (1, C_out, TS); TS is the lane-dense flat tile.
    c = x_ref.shape[1]

    # Pass-through copy of the input channels (sublanes [0, c)).
    o_ref[:, :c, :] = x_ref[...]

    # Fused coordinate channels, derived from the global flat spatial index.
    si = pl.program_id(1)
    idx = (si * ts + lax.broadcasted_iota(jnp.int32, (1, 1, ts), 2)).astype(
        jnp.float32
    )

    # hh = idx // W, ww = idx % W in f32 (idx < 2**24 for any realistic feature
    # map, so the integers are exactly representable); the where-correction
    # absorbs any rounding from the division.
    w_f = jnp.float32(width)
    hh = jnp.floor(idx / w_f)
    ww = idx - hh * w_f
    hh = jnp.where(ww < 0.0, hh - 1.0, hh)
    ww = jnp.where(ww < 0.0, ww + w_f, ww)
    hh = jnp.where(ww >= w_f, hh + 1.0, hh)
    ww = jnp.where(ww >= w_f, ww - w_f, ww)

    xx = hh * scale_x - 1.0      # torch xx_channel: varies along H
    yy = ww * scale_y - 1.0      # torch yy_channel: varies along W
    planes = [xx, yy]
    if with_r:
        planes.append(jnp.sqrt((xx - 0.5) ** 2 + (yy - 0.5) ** 2))

    coords = jnp.concatenate(planes, axis=1)  # (1, c_extra, TS)
    # Single sublane-offset store of the generated channels; masked, but fully
    # hidden under the output DMA in this memory-bound kernel.
    o_ref[:, c:, :] = coords.astype(o_ref.dtype)


def add_coords(x: jax.Array, with_r: bool = False) -> jax.Array:
    """Pallas equivalent of anomalib's AddCoords.forward (NCHW input)."""
    if not jnp.issubdtype(x.dtype, jnp.floating):
        raise TypeError(f"add_coords expects a floating-point input, got {x.dtype}")

    b, c, h, w = x.shape
    c_extra = 3 if with_r else 2
    c_out = c + c_extra
    s = h * w

    # Flatten spatial dims (free for contiguous NCHW) -> lane-dense blocks.
    x_flat = x.reshape(b, c, s)

    # Tile sizing with sublane-padding-aware VMEM accounting.
    itemsize = jnp.dtype(x.dtype).itemsize
    sub = _sublane_tile(itemsize)
    bytes_per_lane = (_round_up(c, sub) + _round_up(c_out, sub)) * itemsize
    lane_cap = max(128, (_WORKING_SET_BYTES // (2 * bytes_per_lane)) // 128 * 128)
    ts = _choose_spatial_tile(s, lane_cap, b)
    num_s_tiles = pl.cdiv(s, ts)

    # scale = 2/(dim-1); keep torch's 0/0 -> nan behaviour when a dim == 1.
    scale_x = (2.0 / (h - 1)) if h > 1 else float("nan")
    scale_y = (2.0 / (w - 1)) if w > 1 else float("nan")

    kernel = functools.partial(
        _add_coords_kernel,
        ts=ts, width=w, scale_x=scale_x, scale_y=scale_y, with_r=with_r,
    )

    out_flat = pl.pallas_call(
        kernel,
        out_shape=jax.ShapeDtypeStruct((b, c_out, s), x.dtype),
        grid_spec=pltpu.PrefetchScalarGridSpec(
            num_scalar_prefetch=0,
            # Batch outer, spatial inner: consecutive steps stream through
            # contiguous HBM; both axes parallel for megacore sharding.
            grid=(b, num_s_tiles),
            in_specs=[pl.BlockSpec((1, c, ts), lambda bi, si: (bi, 0, si))],
            out_specs=pl.BlockSpec((1, c_out, ts), lambda bi, si: (bi, 0, si)),
        ),
        compiler_params=pltpu.CompilerParams(
            dimension_semantics=("parallel", "parallel"),
            vmem_limit_bytes=_vmem_limit_bytes(),
        ),
    )(x_flat)

    return out_flat.reshape(b, c_out, h, w)


# --------------------------------------------------------------------------- #
# Plain-JAX reference mirroring the PyTorch module, for verification.
# --------------------------------------------------------------------------- #
def _reference(x: jax.Array, with_r: bool = False) -> jax.Array:
    b, _, h, w = x.shape
    xx = (jnp.arange(h, dtype=jnp.float32) / (h - 1) * 2.0 - 1.0)[None, None, :, None]
    yy = (jnp.arange(w, dtype=jnp.float32) / (w - 1) * 2.0 - 1.0)[None, None, None, :]
    xx = jnp.broadcast_to(xx, (b, 1, h, w)).astype(x.dtype)
    yy = jnp.broadcast_to(yy, (b, 1, h, w)).astype(x.dtype)
    out = jnp.concatenate([x, xx, yy], axis=1)
    if with_r:
        rr = jnp.sqrt((xx - 0.5) ** 2 + (yy - 0.5) ** 2)
        out = jnp.concatenate([out, rr], axis=1)
    return out


if __name__ == "__main__":
    key = jax.random.PRNGKey(0)
    k0, k1 = jax.random.split(key)

    # Small canonical shape.
    x = jax.random.normal(k0, (2, 4, 16, 16), dtype=jnp.float32)

    out = jax.block_until_ready(add_coords(x, with_r=False))
    ref = _reference(x, with_r=False)
    assert out.shape == (2, 6, 16, 16), out.shape
    assert jnp.allclose(out, ref, atol=1e-6), "mismatch vs reference (with_r=False)"

    out_r = jax.block_until_ready(add_coords(x, with_r=True))
    ref_r = _reference(x, with_r=True)
    assert out_r.shape == (2, 7, 16, 16), out_r.shape
    assert jnp.allclose(out_r, ref_r, atol=1e-6), "mismatch vs reference (with_r=True)"

    # Shape that forces multiple spatial tiles, a ragged last tile, and tiles
    # whose boundaries do not align with rows (exercises hh/ww derivation).
    x2 = jax.random.normal(k1, (1, 3, 40, 72), dtype=jnp.float32)
    out2 = jax.block_until_ready(add_coords(x2, with_r=True))
    ref2 = _reference(x2, with_r=True)
    assert out2.shape == (1, 6, 40, 72), out2.shape
    assert jnp.allclose(out2, ref2, atol=1e-6), "mismatch vs reference (ragged tiles)"

    print("KERNEL_OK")
</pallas_src>

<mosaic_0001>
module attributes {stable_mosaic.version = 11 : i64} {
  func.func @_add_coords_kernel(%arg0: i32, %arg1: i32, %arg2: memref<1x4x256xf32, #tpu.memory_space<vmem>>, %arg3: memref<1x6x256xf32, #tpu.memory_space<vmem>>) attributes {dimension_semantics = [#tpu.dimension_semantics<parallel>, #tpu.dimension_semantics<parallel>], iteration_bounds = array<i64: 2, 1>, scalar_prefetch = 0 : i64, scratch_operands = 0 : i64, tpu.core_type = #tpu.core_type<tc>, window_params = [{transform_indices = @transform_0, window_bounds = array<i64: 1, 4, 256>}, {transform_indices = @transform_1, window_bounds = array<i64: 1, 6, 256>}]} {
    %c0 = arith.constant 0 : index
    %c0_0 = arith.constant 0 : index
    %c0_1 = arith.constant 0 : index
    %0 = vector.load %arg2[%c0, %c0_0, %c0_1] : memref<1x4x256xf32, #tpu.memory_space<vmem>>, vector<1x4x256xf32>
    %c0_2 = arith.constant 0 : index
    %c0_3 = arith.constant 0 : index
    %c0_4 = arith.constant 0 : index
    %1 = vector.load %arg3[%c0_2, %c0_3, %c0_4] : memref<1x6x256xf32, #tpu.memory_space<vmem>>, vector<1x4x256xf32>
    tpu.vector_store %arg3[%c0_2, %c0_3, %c0_4], %0 {strides = array<i32>} : memref<1x6x256xf32, #tpu.memory_space<vmem>>, vector<1x4x256xf32>,
    %c256_i32 = arith.constant 256 : i32
    %2 = arith.muli %arg1, %c256_i32 : i32
    %3 = tpu.iota {dimensions = array<i32: 2>} : vector<1x1x256xi32>
    %4 = vector.broadcast %2 : i32 to vector<1x1x256xi32>
    %5 = arith.addi %4, %3 : vector<1x1x256xi32>
    %6 = arith.sitofp %5 : vector<1x1x256xi32> to vector<1x1x256xf32>
    %cst = arith.constant 1.600000e+01 : f32
    %7 = vector.broadcast %cst : f32 to vector<1x1x256xf32>
    %8 = arith.divf %6, %7 : vector<1x1x256xf32>
    %9 = math.floor %8 : vector<1x1x256xf32>
    %cst_5 = arith.constant 1.600000e+01 : f32
    %10 = vector.broadcast %cst_5 : f32 to vector<1x1x256xf32>
    %11 = arith.mulf %9, %10 : vector<1x1x256xf32>
    %12 = arith.subf %6, %11 : vector<1x1x256xf32>
    %cst_6 = arith.constant 0.000000e+00 : f32
    %13 = vector.broadcast %cst_6 : f32 to vector<1x1x256xf32>
    %14 = arith.cmpf olt, %12, %13 : vector<1x1x256xf32>
    %cst_7 = arith.constant 1.000000e+00 : f32
    %15 = vector.broadcast %cst_7 : f32 to vector<1x1x256xf32>
    %16 = arith.subf %9, %15 : vector<1x1x256xf32>
    %17 = arith.select %14, %16, %9 : vector<1x1x256xi1>, vector<1x1x256xf32>
    %cst_8 = arith.constant 0.000000e+00 : f32
    %18 = vector.broadcast %cst_8 : f32 to vector<1x1x256xf32>
    %19 = arith.cmpf olt, %12, %18 : vector<1x1x256xf32>
    %cst_9 = arith.constant 1.600000e+01 : f32
    %20 = vector.broadcast %cst_9 : f32 to vector<1x1x256xf32>
    %21 = arith.addf %12, %20 : vector<1x1x256xf32>
    %22 = arith.select %19, %21, %12 : vector<1x1x256xi1>, vector<1x1x256xf32>
    %cst_10 = arith.constant 1.600000e+01 : f32
    %23 = vector.broadcast %cst_10 : f32 to vector<1x1x256xf32>
    %24 = arith.cmpf oge, %22, %23 : vector<1x1x256xf32>
    %cst_11 = arith.constant 1.000000e+00 : f32
    %25 = vector.broadcast %cst_11 : f32 to vector<1x1x256xf32>
    %26 = arith.addf %17, %25 : vector<1x1x256xf32>
    %27 = arith.select %24, %26, %17 : vector<1x1x256xi1>, vector<1x1x256xf32>
    %cst_12 = arith.constant 1.600000e+01 : f32
    %28 = vector.broadcast %cst_12 : f32 to vector<1x1x256xf32>
    %29 = arith.cmpf oge, %22, %28 : vector<1x1x256xf32>
    %cst_13 = arith.constant 1.600000e+01 : f32
    %30 = vector.broadcast %cst_13 : f32 to vector<1x1x256xf32>
    %31 = arith.subf %22, %30 : vector<1x1x256xf32>
    %32 = arith.select %29, %31, %22 : vector<1x1x256xi1>, vector<1x1x256xf32>
    %cst_14 = arith.constant 0.13333334 : f32
    %33 = vector.broadcast %cst_14 : f32 to vector<1x1x256xf32>
    %34 = arith.mulf %27, %33 : vector<1x1x256xf32>
    %cst_15 = arith.constant 1.000000e+00 : f32
    %35 = vector.broadcast %cst_15 : f32 to vector<1x1x256xf32>
    %36 = arith.subf %34, %35 : vector<1x1x256xf32>
    %cst_16 = arith.constant 0.13333334 : f32
    %37 = vector.broadcast %cst_16 : f32 to vector<1x1x256xf32>
    %38 = arith.mulf %32, %37 : vector<1x1x256xf32>
    %cst_17 = arith.constant 1.000000e+00 : f32
    %39 = vector.broadcast %cst_17 : f32 to vector<1x1x256xf32>
    %40 = arith.subf %38, %39 : vector<1x1x256xf32>
    %41 = tpu.concatenate %36, %40 in 1 : vector<1x1x256xf32>, vector<1x1x256xf32> -> vector<1x2x256xf32>
    %c0_18 = arith.constant 0 : index
    %c4 = arith.constant 4 : index
    %c0_19 = arith.constant 0 : index
    %42 = vector.load %arg3[%c0_18, %c4, %c0_19] : memref<1x6x256xf32, #tpu.memory_space<vmem>>, vector<1x2x256xf32>
    tpu.vector_store %arg3[%c0_18, %c4, %c0_19], %41 {strides = array<i32>} : memref<1x6x256xf32, #tpu.memory_space<vmem>>, vector<1x2x256xf32>,
    return
  }
  func.func @transform_0(%arg0: i32, %arg1: i32) -> (i32, i32, i32) {
    %c0_i32 = arith.constant 0 : i32
    %c0_i32_0 = arith.constant 0 : i32
    return %arg0, %c0_i32, %arg1 : i32, i32, i32
  }
  func.func @transform_1(%arg0: i32, %arg1: i32) -> (i32, i32, i32) {
    %c0_i32 = arith.constant 0 : i32
    %c0_i32_0 = arith.constant 0 : i32
    return %arg0, %c0_i32, %arg1 : i32, i32, i32
  }
}

</mosaic_0001>

<llo_original>
// kernel: tpu_custom_call.1
$region0: #{tpu_custom_call.1}
  #allocation0 [shape = 'u32[]', space=smem, size = 0x4, offset = 0x4, fixed_abs, tag = 'smem constant byte address 0x4 - core index']
  #allocation1 [shape = 'u32[144,128]{1,0:T(1,128)}', space=vmem, size = 0x12000, scoped, tag = 'internal scratch']
  %s0 = inlined_call_operand.hbm [shape: f32[2,4,256], index: 0, kind: input, shape index: {}]
  %s1 = inlined_call_operand.vmem [shape: f32[2,6,256], index: 1, kind: output, shape index: {}]
  %s2 = sld [smem:[#allocation0]]
  $region41: #{tpu_custom_call.1} parent=0
    _
  %s4 = ssub.s32 1, %s2
  %s5 = scalar_select 0, %s4, %s2
  $region1: #{tpu_custom_call.1} parent=0
    #allocation2 [shape = 'u8[8192]{0}', space=vmem, size = 0x2000, scoped, tag = 'input window, operand 0']
    #allocation3 [shape = 's32[2]{0}', space=sflag, size = 0x8, scoped, tag = 'scoped memory for tpu_custom_call.1']
    %6 = vsyncpa [#allocation3], 0
    %s7 = scalar_lea.sflag [#allocation3], 1
    %8 = vsyncpa %s7, 0
    loop: start=0, step=1, limit=4
    $region2: #{tpu_custom_call.1} parent=1 // loop_pre_header
      _
    $region3: #{tpu_custom_call.1} parent=1 // loop_header
      %s10 = sphi 0, %s14
      %p11 = scmp.ge.s32.totalorder %s10, 4
      %s17 = sphi 0, %s29
      %s18 = sphi 0, %s25
      %s19 = sphi 0, %s17
      %s20 = sphi 0, %s18
      %s21 = sphi 0, %s19
      %s22 = sphi 0, %s20
      %s34 = sphi 0, %s36
      %s37 = sphi 0, %s34
      %s38 = sphi 0, %s37
      %s54 = sphi 0, %s38
      %s62 = sphi 0, %s64
      %s65 = sphi 0, %s62
      %s66 = sphi 0, %s65
      %s82 = sphi 0, %s66
    $region4: #{tpu_custom_call.1} parent=1 // loop_header_branch
      %13 = sbr.rel (%p11) target = $region8
    $region5: #{tpu_custom_call.1} parent=1 // loop_body
      %s15 = ssub.s32 %s10, 1
      %s16 = ssub.s32 %s10, 2
      %s23 = sadd.s32 1, %s18
      %p24 = scmp.ge.s32.totalorder %s23, 1
      %s25 = scalar_select %p24, 0, %s23
      %s26 = sadd.s32 1, %s17
      %s27 = scalar_select %p24, %s26, %s17
      %p28 = scmp.ge.s32.totalorder %s27, 2
      %s29 = scalar_select %p28, 0, %s27
      %s30 = ssub.s32 %s17, %s29
      %s31 = ssub.s32 %s18, %s25
      %s32 = sor.u32 %s30, %s31
      %p33 = scmp.eq.s32.totalorder %s32, 0
      %s35 = sadd.s32 %s34, 1
      %s36 = scalar_select %p33, %s34, %s35
      %p39 = pneg %p33
      %p40 = scmp.eq.s32.totalorder %s10, 1
      %p41 = por %p39, %p40
      %p42 = scmp.ne.s32.totalorder %s34, %s37
      %p43 = scmp.eq.s32.totalorder %s10, 0
      %p44 = por %p42, %p43
      %p45 = scmp.ne.s32.totalorder %s34, %s37
      %p46 = scmp.eq.s32.totalorder %s15, 1
      %p47 = por %p45, %p46
      %p48 = scmp.ne.s32.totalorder %s37, %s38
      %p49 = scmp.eq.s32.totalorder %s15, 0
      %p50 = por %p48, %p49
      %p51 = scmp.ne.s32.totalorder %s37, %s38
      %p52 = scmp.eq.s32.totalorder %s16, 1
      %p53 = por %p51, %p52
      %p55 = scmp.ne.s32.totalorder %s38, %s54
      %p56 = scmp.eq.s32.totalorder %s16, 0
      %p57 = por %p55, %p56
      %s58 = ssub.s32 %s17, %s29
      %s59 = ssub.s32 %s18, %s25
      %s60 = sor.u32 %s58, %s59
      %p61 = scmp.eq.s32.totalorder %s60, 0
      %s63 = sadd.s32 %s62, 1
      %s64 = scalar_select %p61, %s62, %s63
      %p67 = pneg %p61
      %p68 = scmp.eq.s32.totalorder %s10, 1
      %p69 = por %p67, %p68
      %p70 = scmp.ne.s32.totalorder %s62, %s65
      %p71 = scmp.eq.s32.totalorder %s10, 0
      %p72 = por %p70, %p71
      %p73 = scmp.ne.s32.totalorder %s62, %s65
      %p74 = scmp.eq.s32.totalorder %s15, 1
      %p75 = por %p73, %p74
      %p76 = scmp.ne.s32.totalorder %s65, %s66
      %p77 = scmp.eq.s32.totalorder %s15, 0
      %p78 = por %p76, %p77
      %p79 = scmp.ne.s32.totalorder %s65, %s66
      %p80 = scmp.eq.s32.totalorder %s16, 1
      %p81 = por %p79, %p80
      %p83 = scmp.ne.s32.totalorder %s66, %s82
      %p84 = scmp.eq.s32.totalorder %s16, 0
      %p85 = por %p83, %p84
      %p86 = scmp.le.s32.totalorder 1, %s10
      %p87 = scmp.lt.s32.totalorder %s10, 3
      %p88 = pnand %p86, %p87
      %p89 = pneg %p88
      // Predicated region
      $region9: #{tpu_custom_call.1} parent=5 // pred_check
        _
      $region10: #{tpu_custom_call.1} parent=5 // pred_check_branch
        %91 = sbr.rel (%p88) target = $region12
      $region11: #{tpu_custom_call.1} parent=5 // pred_region
        %s92 = ssub.s32 %s10, 1
      $region12: #{tpu_custom_call.1} parent=5 // pred_fallthru
        _
      %p93 = scmp.lt.s32.totalorder %s10, 2
      // Predicated region
      $region13: #{tpu_custom_call.1} parent=5 // pred_check
        %p94 = pneg %p93
      $region14: #{tpu_custom_call.1} parent=5 // pred_check_branch
        %96 = sbr.rel (%p94) target = $region16
      $region15: #{tpu_custom_call.1} parent=5 // pred_region
        // Predicated region
        $region17: #{tpu_custom_call.1} parent=15 // pred_check
          %p97 = pneg %p44
        $region18: #{tpu_custom_call.1} parent=15 // pred_check_branch
          %99 = sbr.rel (%p97) target = $region20
        $region19: #{tpu_custom_call.1} parent=15 // pred_region
          %s100 = sand.u32 %s34, 1
          %s101 = scalar_lea.sflag [#allocation3], %s100
          %s102 = sand.u32 %s34, 1
          %s103 = smul.addr %s102, 8
          %s104 = scalar_lea.vmem [#allocation2], %s103
          %s105 = smul.u32 2, %s18
          %s107 = ssub.s32 128, 128
          %108 = vsyncadd %s101, %s107
          %s109 = smul.addr %s17, 2
          %s110 = sadd.s32 %s105, %s109
          %s111 = smul.addr %s110, 64
          %s112 = scalar_lea.hbm %s0, %s111
          %s114 = sshll.u32 %s104, 4
          %s115 = int_to_ptr.vmem [resolvable:$true] %s114
          %117 = dma.hbm_to_vmem [thread:$0]  %s112, 128, %s115, %s101
        $region20: #{tpu_custom_call.1} parent=15 // pred_fallthru
          _
      $region16: #{tpu_custom_call.1} parent=5 // pred_fallthru
        _
      %p118 = scmp.le.s32.totalorder 1, %s10
      %p119 = scmp.lt.s32.totalorder %s10, 3
      %p120 = pnand %p118, %p119
      %p121 = pneg %p120
      // Predicated region
      $region21: #{tpu_custom_call.1} parent=5 // pred_check
        _
      $region22: #{tpu_custom_call.1} parent=5 // pred_check_branch
        %123 = sbr.rel (%p120) target = $region24
      $region23: #{tpu_custom_call.1} parent=5 // pred_region
        %s124 = ssub.s32 %s10, 1
        %s125 = sand.u32 %s37, 1
        %s126 = scalar_lea.sflag [#allocation3], %s125
        %s127 = sand.u32 %s37, 1
        %s128 = smul.addr %s127, 8
        %s129 = scalar_lea.vmem [#allocation2], %s128
        // Predicated region
        $region25: #{tpu_custom_call.1} parent=23 // pred_check
          %p130 = pneg %p50
        $region26: #{tpu_custom_call.1} parent=23 // pred_check_branch
          %132 = sbr.rel (%p130) target = $region28
        $region27: #{tpu_custom_call.1} parent=23 // pred_region
          %133 = dma.done %s126, 128
        $region28: #{tpu_custom_call.1} parent=23 // pred_fallthru
          _
        %s134 = sand.u32 %s37, 1
        %s135 = scalar_lea.sflag [#allocation3], %s134
        %s136 = sand.u32 %s37, 1
        %s137 = smul.addr %s136, 8
        %s138 = scalar_lea.vmem [#allocation2], %s137
        %p139 = pneg %p50
        %p140 = pneg %p47
        %p141 = pneg %p78
        %p142 = pneg %p75
        %s143 = smul.u32 2, %s20
        %p144 = scmp.lt.s32.totalorder %s19, 1
        %s145 = scalar_select %p144, %s19, 1
        %p146 = scmp.lt.s32.totalorder %s143, 1
        %s147 = scalar_select %p146, %s143, 1
        %s148 = smul.addr %s145, 2
        %s149 = sadd.s32 %s147, %s148
        %s150 = smul.addr %s149, 8
        %s151 = scalar_lea.vmem %s1, %s150
        %s152 = smul.u32 2, %s20
        %s153 = smul.u32 2, %s20
        %p154 = scmp.lt.s32.totalorder %s19, 1
        %s155 = scalar_select %p154, %s19, 1
        %p156 = scmp.lt.s32.totalorder %s153, 1
        %s157 = scalar_select %p156, %s153, 1
        %s158 = smul.addr %s155, 2
        %s159 = sadd.s32 %s157, %s158
        %s160 = smul.addr %s159, 8
        %s161 = scalar_lea.vmem %s1, %s160
        %s162 = smul.u32 2, %s20
        %v163 = vld [vmem:[%s129] sm:$0xff]
        %v165 = vcombine.high %v163, %v163
        %167 = vst [vmem:[%s161] sm:$0xf] %v163
        %168 = vst [vmem:[%s161 + $0x8] sm:$0xf] %v165
        %s169 = smul.u32 %s20, 256
        %v170 = vlaneseq
        %v171 = vand.u32 %v170, 127
        %v172 = vadd.s32 %v171, 128
        %v173 = vstv %s169
        %v174 = vadd.s32 %v173, %v171
        %v175 = vadd.s32 %v173, %v172
        %v176 = vcvt.s32.f32 %v174
        %v177 = vcvt.s32.f32 %v175
        %v178 = vrcp.pop 16.0
        %v179 = vmul.f32 %v176, %v178
        %v180 = vmul.f32 %v177, %v178
        %v181 = vfloor.f32 %v179
        %v182 = vfloor.f32 %v180
        %v183 = vmul.f32 %v181, 16.0
        %v184 = vmul.f32 %v182, 16.0
        %v185 = vsub.f32 %v176, %v183
        %v186 = vsub.f32 %v177, %v184
        %vm187 = vcmp.lt.f32.partialorder %v185, 0.0
        %vm188 = vcmp.lt.f32.partialorder %v186, 0.0
        %v189 = vsub.f32 %v181, 1.0
        %v190 = vsub.f32 %v182, 1.0
        %v191 = vsel %vm187, %v189, %v181
        %v192 = vsel %vm188, %v190, %v182
        %v193 = vadd.f32 %v185, 16.0
        %v194 = vadd.f32 %v186, 16.0
        %v195 = vsel %vm187, %v193, %v185
        %v196 = vsel %vm188, %v194, %v186
        %vm197 = vcmp.ge.f32.partialorder %v195, 16.0
        %vm198 = vcmp.ge.f32.partialorder %v196, 16.0
        %v199 = vadd.f32 %v191, 1.0
        %v200 = vadd.f32 %v192, 1.0
        %v201 = vsel %vm197, %v199, %v191
        %v202 = vsel %vm198, %v200, %v192
        %v203 = vsub.f32 %v195, 16.0
        %v204 = vsub.f32 %v196, 16.0
        %v205 = vsel %vm197, %v203, %v195
        %v206 = vsel %vm198, %v204, %v196
        %v207 = vmul.f32 %v201, 0.13333334
        %v208 = vmul.f32 %v202, 0.13333334
        %v209 = vsub.f32 %v207, 1.0
        %v210 = vsub.f32 %v208, 1.0
        %v211 = vmul.f32 %v205, 0.13333334
        %v212 = vmul.f32 %v206, 0.13333334
        %v213 = vsub.f32 %v211, 1.0
        %v214 = vsub.f32 %v212, 1.0
        %vm215 = vcmask 1040384
        %v216 = vsel %vm215, %v209, %v213
        %v217 = vsel %vm215, %v210, %v214
        %v220 = vrot.slane %v216, 4
        %v221 = vrot.slane %v217, 4
        %224 = vst [vmem:[%s161] sm:$0x30] %v220
        %225 = vst [vmem:[%s161 + $0x8] sm:$0x30] %v221
        %s226 = smul.u32 2, %s20
        %p227 = scmp.lt.s32.totalorder %s19, 1
        %s228 = scalar_select %p227, %s19, 1
        %p229 = scmp.lt.s32.totalorder %s226, 1
        %s230 = scalar_select %p229, %s226, 1
        %s231 = smul.addr %s228, 2
        %s232 = sadd.s32 %s230, %s231
        %s233 = smul.addr %s232, 8
        %s234 = scalar_lea.vmem %s1, %s233
        // Predicated region
        $region29: #{tpu_custom_call.1} parent=23 // pred_check
          %p235 = pneg %p75
        $region30: #{tpu_custom_call.1} parent=23 // pred_check_branch
          %237 = sbr.rel (%p235) target = $region32
        $region31: #{tpu_custom_call.1} parent=23 // pred_region
          %s238 = smul.u32 2, %s20
        $region32: #{tpu_custom_call.1} parent=23 // pred_fallthru
          _
      $region24: #{tpu_custom_call.1} parent=5 // pred_fallthru
        _
      %p239 = scmp.le.s32.totalorder 2, %s10
      // Predicated region
      $region33: #{tpu_custom_call.1} parent=5 // pred_check
        %p240 = pneg %p239
      $region34: #{tpu_custom_call.1} parent=5 // pred_check_branch
        %242 = sbr.rel (%p240) target = $region36
      $region35: #{tpu_custom_call.1} parent=5 // pred_region
        %s243 = ssub.s32 %s10, 2
        // Predicated region
        $region37: #{tpu_custom_call.1} parent=35 // pred_check
          %p244 = pneg %p81
        $region38: #{tpu_custom_call.1} parent=35 // pred_check_branch
          %246 = sbr.rel (%p244) target = $region40
        $region39: #{tpu_custom_call.1} parent=35 // pred_region
          %s247 = smul.u32 2, %s22
          %p248 = scmp.lt.s32.totalorder %s21, 1
          %s249 = scalar_select %p248, %s21, 1
          %p250 = scmp.lt.s32.totalorder %s247, 1
          %s251 = scalar_select %p250, %s247, 1
          %s252 = smul.addr %s249, 2
          %s253 = sadd.s32 %s251, %s252
          %s254 = smul.addr %s253, 8
          %s255 = scalar_lea.vmem %s1, %s254
        $region40: #{tpu_custom_call.1} parent=35 // pred_fallthru
          _
      $region36: #{tpu_custom_call.1} parent=5 // pred_fallthru
        _
    $region6: #{tpu_custom_call.1} parent=1 // loop_footer
      %s14 = sadd.s32 1, %s10
    $region7: #{tpu_custom_call.1} parent=1 // loop_footer_branch
      %9 = sbr.rel target = $region3
    $region8: #{tpu_custom_call.1} parent=1 // loop_exit
      _
    %256 = vsyncpa [#allocation3], 1
    %s257 = scalar_lea.sflag [#allocation3], 1
    %258 = vsyncpa %s257, 1

</llo_original>
